<compile_context>
chip_gen: v7x
topology: tpu7x:2x2x1
jax: 0.10.0
libtpu: 0.0.40
codegen_flags: <defaults>
</compile_context>

<pallas_src>
import jax
import jax.numpy as jnp
from jax.experimental import pallas as pl
from jax.experimental.pallas import tpu as pltpu

L = 48  # sequence length fixed by the model (Linear(48, a))


def cnn_kernel(wc_ref, bc_ref, wt_ref, bt_ref,   # SMEM scalar params
               x_ref, w12_ref, b12_ref,          # VMEM tensors
               o_ref):
    # x_ref: (TM, 48) f32 tile of the (padded) batch.
    x = x_ref[...]

    # encoder Conv1d(1,1,k=1) + ReLU  ->  scalar affine + ReLU (VPU).
    h = jnp.maximum(x * wc_ref[0, 0] + bc_ref[0, 0], 0.0)

    # Fused Linear(48,a) -> Linear(a,48): one 48x48 matmul (exact; no
    # nonlinearity between the two Linears in the reference model).
    y = jnp.dot(h, w12_ref[...], preferred_element_type=jnp.float32) + b12_ref[...]
    y = jnp.maximum(y, 0.0)                       # decoder ReLU

    # decoder ConvTranspose1d(1,1,k=1): scalar affine (NOT foldable into the
    # matmul because the ReLU sits between them).
    o_ref[...] = y * wt_ref[0, 0] + bt_ref[0, 0]


def cnn_forward(x_ncl, params, *, tm_max=4096):
    """x_ncl: (N, 1, 48) float32 -> (N, 1, 48) float32."""
    N, C, Lx = x_ncl.shape
    assert C == 1 and Lx == L
    (wc, bc, w1t, b1, w2t, b2, wt, bt) = params

    # Fold the two Linear layers on the host (tiny one-time matmul).
    w12 = jnp.dot(w1t, w2t, preferred_element_type=jnp.float32)      # (48, 48)
    b12 = jnp.dot(b1, w2t, preferred_element_type=jnp.float32) + b2  # (1, 48)

    x2d = x_ncl.reshape(N, L)

    # Batch tiling: row tile TM (multiple of 8), pad N up to a tile multiple.
    n8 = max(8, ((N + 7) // 8) * 8)
    tm = min(tm_max, n8)
    n_pad = pl.cdiv(N, tm) * tm
    if n_pad != N:
        x2d = jnp.pad(x2d, ((0, n_pad - N), (0, 0)))
    grid = (n_pad // tm,)

    smem = pl.BlockSpec(memory_space=pltpu.MemorySpace.SMEM)
    cost = pl.CostEstimate(
        flops=2 * n_pad * L * L + 6 * n_pad * L,
        transcendentals=0,
        bytes_accessed=2 * n_pad * L * 4 + (L * L + L + 4) * 4,
    )

    out = pl.pallas_call(
        cnn_kernel,
        out_shape=jax.ShapeDtypeStruct((n_pad, L), jnp.float32),
        grid=grid,
        in_specs=[
            smem, smem, smem, smem,                      # wc, bc, wt, bt
            pl.BlockSpec((tm, L), lambda i: (i, 0)),     # x tile (pipelined)
            pl.BlockSpec((L, L), lambda i: (0, 0)),      # fused weight (resident)
            pl.BlockSpec((1, L), lambda i: (0, 0)),      # fused bias (resident)
        ],
        out_specs=pl.BlockSpec((tm, L), lambda i: (i, 0)),
        compiler_params=pltpu.CompilerParams(
            dimension_semantics=("parallel",)),
        cost_estimate=cost,
    )(wc, bc, wt, bt, x2d, w12, b12)

    return out[:N].reshape(N, 1, L)


def init_params(key, a):
    """Deterministic synthetic parameters matching the PyTorch module shapes."""
    ks = jax.random.split(key, 8)
    # Conv1d(1,1,1): weight (1,1,1) -> scalar, bias (1,) -> scalar
    wc = jax.random.uniform(ks[0], (1, 1), jnp.float32, -1.0, 1.0)
    bc = jax.random.uniform(ks[1], (1, 1), jnp.float32, -1.0, 1.0)
    # Linear(48, a): weight (a, 48) in torch; store transposed (48, a)
    lim1 = 1.0 / jnp.sqrt(48.0)
    w1t = jax.random.uniform(ks[2], (48, a), jnp.float32, -lim1, lim1)
    b1 = jax.random.uniform(ks[3], (1, a), jnp.float32, -lim1, lim1)
    # Linear(a, 48): weight (48, a) in torch; store transposed (a, 48)
    lim2 = 1.0 / jnp.sqrt(float(a))
    w2t = jax.random.uniform(ks[4], (a, 48), jnp.float32, -lim2, lim2)
    b2 = jax.random.uniform(ks[5], (1, 48), jnp.float32, -lim2, lim2)
    # ConvTranspose1d(1,1,1): weight (1,1,1) -> scalar, bias (1,) -> scalar
    wt = jax.random.uniform(ks[6], (1, 1), jnp.float32, -1.0, 1.0)
    bt = jax.random.uniform(ks[7], (1, 1), jnp.float32, -1.0, 1.0)
    return (wc, bc, w1t, b1, w2t, b2, wt, bt)


def cnn_reference(x_ncl, params):
    """Pure-JAX reference of the PyTorch forward (unfused) for correctness."""
    (wc, bc, w1t, b1, w2t, b2, wt, bt) = params
    x = x_ncl[:, 0, :]                                  # (N, 48)
    h = jnp.maximum(x * wc[0, 0] + bc[0, 0], 0.0)       # Conv1d(k=1) + ReLU
    z = h @ w1t + b1                                    # Linear(48, a)
    y = jnp.maximum(z @ w2t + b2, 0.0)                  # Linear(a, 48) + ReLU
    o = y * wt[0, 0] + bt[0, 0]                         # ConvTranspose1d(k=1)
    return o[:, None, :]


if __name__ == "__main__":
    a = 32          # bottleneck dim
    N = 2           # batch
    key = jax.random.PRNGKey(0)
    k_x, k_p = jax.random.split(key)

    x = jax.random.normal(k_x, (N, 1, L), jnp.float32)
    params = init_params(k_p, a)

    out = jax.block_until_ready(cnn_forward(x, params))

    ref = cnn_reference(x, params)
    assert out.shape == (N, 1, L)
    assert jnp.allclose(out, ref, atol=1e-4, rtol=1e-4), "mismatch vs reference"

    print("KERNEL_OK")
</pallas_src>

<mosaic_0001>
module attributes {stable_mosaic.version = 11 : i64} {
  func.func @cnn_kernel(%arg0: i32, %arg1: memref<1x1xf32, #tpu.memory_space<smem>>, %arg2: memref<1x1xf32, #tpu.memory_space<smem>>, %arg3: memref<1x1xf32, #tpu.memory_space<smem>>, %arg4: memref<1x1xf32, #tpu.memory_space<smem>>, %arg5: memref<8x48xf32, #tpu.memory_space<vmem>>, %arg6: memref<48x48xf32, #tpu.memory_space<vmem>>, %arg7: memref<1x48xf32, #tpu.memory_space<vmem>>, %arg8: memref<8x48xf32, #tpu.memory_space<vmem>>) attributes {dimension_semantics = [#tpu.dimension_semantics<parallel>], iteration_bounds = array<i64: 1>, scalar_prefetch = 0 : i64, scratch_operands = 0 : i64, tpu.core_type = #tpu.core_type<tc>, window_params = [{transform_indices = @transform_0, window_bounds = array<i64: 1, 1>}, {transform_indices = @transform_1, window_bounds = array<i64: 1, 1>}, {transform_indices = @transform_2, window_bounds = array<i64: 1, 1>}, {transform_indices = @transform_3, window_bounds = array<i64: 1, 1>}, {transform_indices = @transform_4, window_bounds = array<i64: 8, 48>}, {pipeline_mode = #tpu.pipeline_mode<synchronous>, transform_indices = @transform_5, window_bounds = array<i64: 48, 48>}, {pipeline_mode = #tpu.pipeline_mode<synchronous>, transform_indices = @transform_6, window_bounds = array<i64: 1, 48>}, {transform_indices = @transform_7, window_bounds = array<i64: 8, 48>}]} {
    %c0 = arith.constant 0 : index
    %c0_0 = arith.constant 0 : index
    %0 = vector.load %arg5[%c0, %c0_0] : memref<8x48xf32, #tpu.memory_space<vmem>>, vector<8x48xf32>
    %c0_1 = arith.constant 0 : index
    %c0_2 = arith.constant 0 : index
    %1 = memref.load %arg1[%c0_1, %c0_2] : memref<1x1xf32, #tpu.memory_space<smem>>
    %2 = vector.broadcast %1 : f32 to vector<8x48xf32>
    %3 = arith.mulf %0, %2 : vector<8x48xf32>
    %c0_3 = arith.constant 0 : index
    %c0_4 = arith.constant 0 : index
    %4 = memref.load %arg2[%c0_3, %c0_4] : memref<1x1xf32, #tpu.memory_space<smem>>
    %5 = vector.broadcast %4 : f32 to vector<8x48xf32>
    %6 = arith.addf %3, %5 : vector<8x48xf32>
    %cst = arith.constant 0.000000e+00 : f32
    %7 = vector.broadcast %cst : f32 to vector<8x48xf32>
    %8 = arith.maximumf %6, %7 : vector<8x48xf32>
    %c0_5 = arith.constant 0 : index
    %c0_6 = arith.constant 0 : index
    %9 = vector.load %arg6[%c0_5, %c0_6] : memref<48x48xf32, #tpu.memory_space<vmem>>, vector<48x48xf32>
    %cst_7 = arith.constant dense<0.000000e+00> : vector<8x48xf32>
    %10 = tpu.matmul %8, %9, %cst_7 {dimension_numbers = #tpu.dot_dimension_numbers<[1], [0], [0], [1], [0, 0, 1, 1], [], []>} : vector<8x48xf32>, vector<48x48xf32>, vector<8x48xf32> -> vector<8x48xf32>
    %c0_8 = arith.constant 0 : index
    %c0_9 = arith.constant 0 : index
    %11 = vector.load %arg7[%c0_8, %c0_9] : memref<1x48xf32, #tpu.memory_space<vmem>>, vector<1x48xf32>
    %12 = vector.broadcast %11 : vector<1x48xf32> to vector<8x48xf32>
    %13 = arith.addf %10, %12 : vector<8x48xf32>
    %cst_10 = arith.constant 0.000000e+00 : f32
    %14 = vector.broadcast %cst_10 : f32 to vector<8x48xf32>
    %15 = arith.maximumf %13, %14 : vector<8x48xf32>
    %c0_11 = arith.constant 0 : index
    %c0_12 = arith.constant 0 : index
    %16 = memref.load %arg3[%c0_11, %c0_12] : memref<1x1xf32, #tpu.memory_space<smem>>
    %17 = vector.broadcast %16 : f32 to vector<8x48xf32>
    %18 = arith.mulf %15, %17 : vector<8x48xf32>
    %c0_13 = arith.constant 0 : index
    %c0_14 = arith.constant 0 : index
    %19 = memref.load %arg4[%c0_13, %c0_14] : memref<1x1xf32, #tpu.memory_space<smem>>
    %20 = vector.broadcast %19 : f32 to vector<8x48xf32>
    %21 = arith.addf %18, %20 : vector<8x48xf32>
    %c0_15 = arith.constant 0 : index
    %c0_16 = arith.constant 0 : index
    %22 = vector.load %arg8[%c0_15, %c0_16] : memref<8x48xf32, #tpu.memory_space<vmem>>, vector<8x48xf32>
    tpu.vector_store %arg8[%c0_15, %c0_16], %21 {strides = array<i32>} : memref<8x48xf32, #tpu.memory_space<vmem>>, vector<8x48xf32>,
    return
  }
  func.func @transform_0(%arg0: i32) -> (i32, i32) {
    %c0_i32 = arith.constant 0 : i32
    %c0_i32_0 = arith.constant 0 : i32
    %c0_i32_1 = arith.constant 0 : i32
    return %c0_i32, %c0_i32_0 : i32, i32
  }
  func.func @transform_1(%arg0: i32) -> (i32, i32) {
    %c0_i32 = arith.constant 0 : i32
    %c0_i32_0 = arith.constant 0 : i32
    %c0_i32_1 = arith.constant 0 : i32
    return %c0_i32, %c0_i32_0 : i32, i32
  }
  func.func @transform_2(%arg0: i32) -> (i32, i32) {
    %c0_i32 = arith.constant 0 : i32
    %c0_i32_0 = arith.constant 0 : i32
    %c0_i32_1 = arith.constant 0 : i32
    return %c0_i32, %c0_i32_0 : i32, i32
  }
  func.func @transform_3(%arg0: i32) -> (i32, i32) {
    %c0_i32 = arith.constant 0 : i32
    %c0_i32_0 = arith.constant 0 : i32
    %c0_i32_1 = arith.constant 0 : i32
    return %c0_i32, %c0_i32_0 : i32, i32
  }
  func.func @transform_4(%arg0: i32) -> (i32, i32) {
    %c0_i32 = arith.constant 0 : i32
    %c0_i32_0 = arith.constant 0 : i32
    return %arg0, %c0_i32 : i32, i32
  }
  func.func @transform_5(%arg0: i32) -> (i32, i32) {
    %c0_i32 = arith.constant 0 : i32
    %c0_i32_0 = arith.constant 0 : i32
    %c0_i32_1 = arith.constant 0 : i32
    return %c0_i32, %c0_i32_0 : i32, i32
  }
  func.func @transform_6(%arg0: i32) -> (i32, i32) {
    %c0_i32 = arith.constant 0 : i32
    %c0_i32_0 = arith.constant 0 : i32
    %c0_i32_1 = arith.constant 0 : i32
    return %c0_i32, %c0_i32_0 : i32, i32
  }
  func.func @transform_7(%arg0: i32) -> (i32, i32) {
    %c0_i32 = arith.constant 0 : i32
    %c0_i32_0 = arith.constant 0 : i32
    return %arg0, %c0_i32 : i32, i32
  }
}

</mosaic_0001>

<llo_original>
// kernel: tpu_custom_call.1
$region0: #{tpu_custom_call.1}
  #allocation0 [shape = 'u32[]', space=smem, size = 0x4, offset = 0x4, fixed_abs, tag = 'smem constant byte address 0x4 - core index']
  #allocation1 [shape = 'u32[144,128]{1,0:T(1,128)}', space=vmem, size = 0x12000, scoped, tag = 'internal scratch']
  #allocation2 [shape = 'f32[1,1]{1,0:T(1,128)S(6)}', space=smem, size = 0x200, scoped, tag = 'scoped memory for tpu_custom_call.1']
  #allocation3 [shape = 'f32[1,1]{1,0:T(1,128)S(6)}', space=smem, size = 0x200, scoped, tag = 'scoped memory for tpu_custom_call.1']
  #allocation4 [shape = 'f32[1,1]{1,0:T(1,128)S(6)}', space=smem, size = 0x200, scoped, tag = 'scoped memory for tpu_custom_call.1']
  #allocation5 [shape = 'f32[1,1]{1,0:T(1,128)S(6)}', space=smem, size = 0x200, scoped, tag = 'scoped memory for tpu_custom_call.1']
  %s0 = inlined_call_operand.<no memory space> [shape: f32[1,1], index: 0, kind: input, shape index: {}]
  %s1 = inlined_call_operand.<no memory space> [shape: f32[1,1], index: 1, kind: input, shape index: {}]
  %s2 = inlined_call_operand.<no memory space> [shape: f32[1,1], index: 2, kind: input, shape index: {}]
  %s3 = inlined_call_operand.<no memory space> [shape: f32[1,1], index: 3, kind: input, shape index: {}]
  %s4 = inlined_call_operand.vmem [shape: f32[8,48], index: 4, kind: input, shape index: {}]
  %s5 = inlined_call_operand.hbm [shape: f32[48,48], index: 5, kind: input, shape index: {}]
  %s6 = inlined_call_operand.vmem [shape: f32[1,48], index: 6, kind: input, shape index: {}]
  %s7 = inlined_call_operand.hbm [shape: f32[8,48], index: 7, kind: output, shape index: {}]
  %s8 = sld [smem:[#allocation0]]
  $region42: #{tpu_custom_call.1} parent=0
    _
  %s10 = ssub.s32 1, %s8
  %s11 = scalar_select 0, %s10, %s8
  %12 = sst [smem:[#allocation2]] %s0
  %13 = sst [smem:[#allocation3]] %s1
  %14 = sst [smem:[#allocation4]] %s2
  %15 = sst [smem:[#allocation5]] %s3
  $region1: #{tpu_custom_call.1} parent=0
    #allocation6 [shape = 'u8[24576]{0}', space=vmem, size = 0x6000, scoped, tag = 'input window, operand 5, single buffered']
    #allocation7 [shape = 's32[1]{0}', space=sflag, size = 0x4, scoped, tag = 'scoped memory for tpu_custom_call.1']
    #allocation8 [shape = 's32[1]{0}', space=sflag, size = 0x4, scoped, tag = 'scoped memory for tpu_custom_call.1']
    #allocation9 [shape = 'u8[4096]{0}', space=vmem, size = 0x1000, scoped, tag = 'output window, operand 0, single buffered']
    %16 = vsyncpa [#allocation7], 0
    %17 = vsyncpa [#allocation8], 0
    // Predicated region
    $region2: #{tpu_custom_call.1} parent=1 // pred_check
      _
    $region3: #{tpu_custom_call.1} parent=1 // pred_check_branch
      %19 = sbr.rel (0) target = $region5
    $region4: #{tpu_custom_call.1} parent=1 // pred_region
      _
    $region5: #{tpu_custom_call.1} parent=1 // pred_fallthru
      _
    // Predicated region
    $region6: #{tpu_custom_call.1} parent=1 // pred_check
      _
    $region7: #{tpu_custom_call.1} parent=1 // pred_check_branch
      %21 = sbr.rel (0) target = $region9
    $region8: #{tpu_custom_call.1} parent=1 // pred_region
      _
    $region9: #{tpu_custom_call.1} parent=1 // pred_fallthru
      _
    // Predicated region
    $region10: #{tpu_custom_call.1} parent=1 // pred_check
      _
    $region11: #{tpu_custom_call.1} parent=1 // pred_check_branch
      %23 = sbr.rel (0) target = $region13
    $region12: #{tpu_custom_call.1} parent=1 // pred_region
      _
    $region13: #{tpu_custom_call.1} parent=1 // pred_fallthru
      _
    // Predicated region
    $region14: #{tpu_custom_call.1} parent=1 // pred_check
      _
    $region15: #{tpu_custom_call.1} parent=1 // pred_check_branch
      %25 = sbr.rel (0) target = $region17
    $region16: #{tpu_custom_call.1} parent=1 // pred_region
      _
    $region17: #{tpu_custom_call.1} parent=1 // pred_fallthru
      _
    // Predicated region
    $region18: #{tpu_custom_call.1} parent=1 // pred_check
      _
    $region19: #{tpu_custom_call.1} parent=1 // pred_check_branch
      %27 = sbr.rel (0) target = $region21
    $region20: #{tpu_custom_call.1} parent=1 // pred_region
      _
    $region21: #{tpu_custom_call.1} parent=1 // pred_fallthru
      _
    // Predicated region
    $region22: #{tpu_custom_call.1} parent=1 // pred_check
      _
    $region23: #{tpu_custom_call.1} parent=1 // pred_check_branch
      %29 = sbr.rel (0) target = $region25
    $region24: #{tpu_custom_call.1} parent=1 // pred_region
      %s31 = ssub.s32 768, 768
      %32 = vsyncadd [#allocation7], %s31
      %s33 = sshll.u32 [#allocation6], 4
      %s34 = int_to_ptr.vmem [resolvable:$true] %s33
      %39 = dma.hbm_to_vmem [thread:$0]  %s5, 768, %s34, [#allocation7], 128, 128, 8
    $region25: #{tpu_custom_call.1} parent=1 // pred_fallthru
      _
    // Predicated region
    $region26: #{tpu_custom_call.1} parent=1 // pred_check
      _
    $region27: #{tpu_custom_call.1} parent=1 // pred_check_branch
      %41 = sbr.rel (0) target = $region29
    $region28: #{tpu_custom_call.1} parent=1 // pred_region
      _
    $region29: #{tpu_custom_call.1} parent=1 // pred_fallthru
      _
    // Predicated region
    $region30: #{tpu_custom_call.1} parent=1 // pred_check
      _
    $region31: #{tpu_custom_call.1} parent=1 // pred_check_branch
      %43 = sbr.rel (0) target = $region33
    $region32: #{tpu_custom_call.1} parent=1 // pred_region
      %44 = dma.done [#allocation7], 768
    $region33: #{tpu_custom_call.1} parent=1 // pred_fallthru
      _
    %v45 = vld [vmem:[%s4] sm:$0xff]
    %s46 = sld [smem:[#allocation2]]
    %v47 = vstv %s46
    %v48 = vmul.f32 %v45, %v47
    %s49 = sld [smem:[#allocation3]]
    %v50 = vstv %s49
    %v51 = vadd.f32 %v48, %v50
    %v52 = vmax.f32 %v51, 0.0
    %v53 = vld [vmem:[#allocation6] sm:$0xff]
    %v54 = vld [vmem:[#allocation6 + $0x8] sm:$0xff]
    %v55 = vld [vmem:[#allocation6 + $0x10] sm:$0xff]
    %v56 = vld [vmem:[#allocation6 + $0x18] sm:$0xff]
    %v57 = vld [vmem:[#allocation6 + $0x20] sm:$0xff]
    %v58 = vld [vmem:[#allocation6 + $0x28] sm:$0xff]
    %v59 = vld [vmem:[%s6] sm:$0x1]
    %v61 = vlaneseq
    %v62 = vshrl.u32 %v61, 7
    %v63 = vsub.s32 0, %v62
    %v64 = vrot.slane %v59, %v63
    %vm66 = vcmask 392192
    %v68 = vsel %vm66, %v52, 0
    %70 = vmatprep.subr.mxu0 0.0
    %71 = vmatpush1.msra.mxu0 %v53
    %72 = vmatprep.subr.mxu0 0.0
    %73 = vmatpush1.msra.mxu0 %v54
    %74 = vmatprep.subr.mxu0 0.0
    %75 = vmatpush1.msra.mxu0 %v55
    %76 = vmatprep.subr.mxu0 0.0
    %77 = vmatpush1.msra.mxu0 %v56
    %78 = vmatprep.subr.mxu0 0.0
    %79 = vmatpush1.msra.mxu0 %v57
    %80 = vmatprep.subr.mxu0 0.0
    %81 = vmatpush1.msra.mxu0 %v58
    %82 = vmatprep.subr.mxu0 0.0
    %83 = vmatpush1.msra.mxu0 0.0
    %84 = vmatprep.subr.mxu0 0.0
    %85 = vmatpush1.msra.mxu0 0.0
    %86 = vmatprep.subr.mxu0 0.0
    %87 = vmatpush1.msra.mxu0 0.0
    %88 = vmatprep.subr.mxu0 0.0
    %89 = vmatpush1.msra.mxu0 0.0
    %90 = vmatprep.subr.mxu0 0.0
    %91 = vmatpush1.msra.mxu0 0.0
    %92 = vmatprep.subr.mxu0 0.0
    %93 = vmatpush1.msra.mxu0 0.0
    %94 = vmatprep.subr.mxu0 0.0
    %95 = vmatpush1.msra.mxu0 0.0
    %96 = vmatprep.subr.mxu0 0.0
    %97 = vmatpush1.msra.mxu0 0.0
    %98 = vmatprep.subr.mxu0 0.0
    %99 = vmatpush1.msra.mxu0 0.0
    %100 = vmatprep.subr.mxu0 0.0
    %101 = vmatpush1.msra.mxu0 0.0
    %102 = vmatprep.subr.mxu0 0.0
    %103 = vmatpush1.msra.mxu0 0.0
    %104 = vmatprep.subr.mxu0 0.0
    %105 = vmatpush1.msra.mxu0 0.0
    %106 = vmatprep.subr.mxu0 0.0
    %107 = vmatpush1.msra.mxu0 0.0
    %108 = vmatprep.subr.mxu0 0.0
    %109 = vmatpush1.msra.mxu0 0.0
    %110 = vmatprep.subr.mxu0 0.0
    %111 = vmatpush1.msra.mxu0 0.0
    %112 = vmatprep.subr.mxu0 0.0
    %113 = vmatpush1.msra.mxu0 0.0
    %114 = vmatprep.subr.mxu0 0.0
    %115 = vmatpush1.msra.mxu0 0.0
    %116 = vmatprep.subr.mxu0 0.0
    %117 = vmatpush1.msra.mxu0 0.0
    %118 = vmatprep.subr.mxu0 0.0
    %119 = vmatpush1.msra.mxu0 0.0
    %120 = vmatprep.subr.mxu0 0.0
    %121 = vmatpush1.msra.mxu0 0.0
    %122 = vmatprep.subr.mxu0 0.0
    %123 = vmatpush1.msra.mxu0 0.0
    %124 = vmatprep.subr.mxu0 0.0
    %125 = vmatpush1.msra.mxu0 0.0
    %126 = vmatprep.subr.mxu0 0.0
    %127 = vmatpush1.msra.mxu0 0.0
    %128 = vmatprep.subr.mxu0 0.0
    %129 = vmatpush1.msra.mxu0 0.0
    %130 = vmatprep.subr.mxu0 0.0
    %131 = vmatpush1.msra.mxu0 0.0
    %132 = vmatprep.subr.mxu0 0.0
    %133 = vmatpush1.msra.mxu0 0.0
    %134 = vmatprep.mubr.f32.mxu0 0.0
    %135 = vmatmul.mubr.f32.gmra.mrb[0].mxu0 %v68
    %v136 = vpop.f32.mrb[0].mxu0
    %v137 = vadd.f32 %v64, %v136
    %v138 = vpop.f32.mrb[0].mxu0
    %139 = vdwg.mxu0
    %v140 = vmax.f32 %v137, 0.0
    %s141 = sld [smem:[#allocation4]]
    %v142 = vstv %s141
    %v143 = vmul.f32 %v140, %v142
    %s144 = sld [smem:[#allocation5]]
    %v145 = vstv %s144
    %v146 = vadd.f32 %v143, %v145
    %147 = vst.msk [vmem:[#allocation9] sm:$0xff] %vm66, %v146
    // Predicated region
    $region34: #{tpu_custom_call.1} parent=1 // pred_check
      _
    $region35: #{tpu_custom_call.1} parent=1 // pred_check_branch
      %149 = sbr.rel (0) target = $region37
    $region36: #{tpu_custom_call.1} parent=1 // pred_region
      %s151 = ssub.s32 128, 128
      %152 = vsyncadd [#allocation8], %s151
      %s154 = sshll.u32 [#allocation9], 4
      %s155 = int_to_ptr.vmem [resolvable:$true] %s154
      %157 = dma.vmem_to_hbm [thread:$0]  %s155, 128, %s7, [#allocation8]
    $region37: #{tpu_custom_call.1} parent=1 // pred_fallthru
      _
    // Predicated region
    $region38: #{tpu_custom_call.1} parent=1 // pred_check
      _
    $region39: #{tpu_custom_call.1} parent=1 // pred_check_branch
      %159 = sbr.rel (0) target = $region41
    $region40: #{tpu_custom_call.1} parent=1 // pred_region
      %160 = dma.done [#allocation8], 128
    $region41: #{tpu_custom_call.1} parent=1 // pred_fallthru
      _
    %161 = vsyncpa [#allocation7], 1
    %162 = vsyncpa [#allocation8], 1

</llo_original>
